<compile_context>
chip_gen: v7x
topology: tpu7x:2x2x1
jax: 0.10.0
libtpu: 0.0.40
codegen_flags: <defaults>
</compile_context>

<pallas_src>
import jax
import jax.numpy as jnp
from jax import lax
from jax.experimental import pallas as pl
from jax.experimental.pallas import tpu as pltpu


def value_net_kernel(x_ref, w1_ref, b1_ref, w2_ref, b2_ref, w3_ref, b3_ref, o_ref):
    """One batch tile of valueNet.

    x_ref : (Bt, state_dim) bf16   -- natural PyTorch row layout
    w*    : PyTorch (out, in) layout, bf16 (same resident block every step)
    b1/b2 : (hidden, 1) f32 in VMEM;  b3 : (1, 1) f32 in SMEM
    o_ref : (1, Bt) f32            -- batch on the 128-lane axis (lane-dense)
    """
    # fc1 + ReLU: contract W1 dim 1 with x dim 1 -> result (hidden, Bt) keeps
    # batch on lanes; bf16 x bf16 with f32 accumulation on the MXU.
    dn = (((1,), (1,)), ((), ()))
    h1 = lax.dot_general(w1_ref[...], x_ref[...], dn,
                         preferred_element_type=jnp.float32)
    h1 = jnp.maximum(h1 + b1_ref[...], 0.0)                     # (hidden, Bt) f32

    # fc2 + ReLU: single-pass bf16 MXU (activations cast down, f32 accum).
    h2 = jnp.dot(w2_ref[...], h1.astype(jnp.bfloat16),
                 preferred_element_type=jnp.float32)
    h2 = jnp.maximum(h2 + b2_ref[...], 0.0)                     # (hidden, Bt) f32

    # head: (1, hidden) . (hidden, Bt) -> (1, Bt), scalar bias from SMEM.
    v = jnp.dot(w3_ref[...], h2.astype(jnp.bfloat16),
                preferred_element_type=jnp.float32)
    o_ref[...] = (v + b3_ref[0, 0]).astype(o_ref.dtype)


def _choose_batch_tile(B, requested):
    """128-aligned tile, VMEM-capped, >=2 parallel grid steps when possible."""
    bt = max(128, int(requested))
    bt = ((bt + 127) // 128) * 128            # lane-dense: multiple of 128
    bt = min(bt, 8192)                        # VMEM discipline (v5e/v7x budgets)
    min_padded = ((B + 127) // 128) * 128
    bt = min(bt, min_padded)                  # do not over-pad tiny batches
    if min_padded >= 2 * 128:                 # keep grid >= 2 for v7x megacore
        half = max(128, (min_padded // 2) // 128 * 128)
        bt = min(bt, half)
    return bt


def value_net_forward(x, w1, b1, w2, b2, w3, b3, *, batch_tile=4096):
    """valueNet forward.

    x  : [B, state_dim] f32 (row-major, as PyTorch)
    w1 : [hidden, state_dim], b1: [hidden]   (nn.Linear (out, in) layout)
    w2 : [hidden, hidden],    b2: [hidden]
    w3 : [1, hidden],         b3: [1]
    Returns [B, 1] f32.
    """
    B, state_dim = x.shape
    hidden = w1.shape[0]

    bt = _choose_batch_tile(B, batch_tile)
    Bp = ((B + bt - 1) // bt) * bt
    grid = (Bp // bt,)

    # Single fused pad + bf16 cast of x in its natural layout (one HBM pass).
    xb = x.astype(jnp.bfloat16)
    if Bp != B:
        xb = jnp.pad(xb, ((0, Bp - B), (0, 0)))

    w1b = w1.astype(jnp.bfloat16)
    w2b = w2.astype(jnp.bfloat16)
    w3b = w3.astype(jnp.bfloat16)
    b1c = b1.reshape(hidden, 1).astype(jnp.float32)
    b2c = b2.reshape(hidden, 1).astype(jnp.float32)
    b3c = b3.reshape(1, 1).astype(jnp.float32)

    const = lambda i: (0, 0)  # weights / biases: same (tiny) block every grid step

    cost = pl.CostEstimate(
        flops=2 * Bp * (state_dim * hidden + hidden * hidden + hidden),
        transcendentals=0,
        bytes_accessed=(Bp * state_dim * 2            # x (bf16)
                        + Bp * 4                      # out (f32)
                        + (hidden * state_dim + hidden * hidden + hidden) * 2
                        + (2 * hidden + 1) * 4),
    )

    out_t = pl.pallas_call(
        value_net_kernel,
        out_shape=jax.ShapeDtypeStruct((1, Bp), jnp.float32),
        grid_spec=pltpu.PrefetchScalarGridSpec(
            num_scalar_prefetch=0,
            grid=grid,
            in_specs=[
                pl.BlockSpec((bt, state_dim), lambda i: (i, 0)),       # x tile
                pl.BlockSpec((hidden, state_dim), const),              # W1
                pl.BlockSpec((hidden, 1), const),                      # b1
                pl.BlockSpec((hidden, hidden), const),                 # W2
                pl.BlockSpec((hidden, 1), const),                      # b2
                pl.BlockSpec((1, hidden), const),                      # W3
                pl.BlockSpec(memory_space=pltpu.MemorySpace.SMEM),     # b3 scalar
            ],
            out_specs=pl.BlockSpec((1, bt), lambda i: (0, i)),
        ),
        compiler_params=pltpu.CompilerParams(
            dimension_semantics=("parallel",),   # batch tiles shard across TCs
            vmem_limit_bytes=32 * 1024 * 1024,   # explicit budget (v5e/v7x safe)
        ),
        cost_estimate=cost,
    )(xb, w1b, b1c, w2b, b2c, w3b, b3c)

    return out_t[0, :B].reshape(B, 1)


def orthogonal_linear_params(key, in_dim, out_dim, gain=1.0):
    """nn.Linear + orthogonal_init: weight (out, in) orthogonal, bias 0."""
    w = jax.nn.initializers.orthogonal(scale=gain)(key, (out_dim, in_dim), jnp.float32)
    b = jnp.zeros((out_dim,), jnp.float32)
    return w, b


def value_net_reference(x, w1, b1, w2, b2, w3, b3):
    """Pure-JAX reference mirroring the kernel's bf16 matmul operands."""
    bf = lambda a: a.astype(jnp.bfloat16)
    h1 = jnp.maximum(
        jnp.dot(bf(x), bf(w1).T, preferred_element_type=jnp.float32) + b1, 0.0)
    h2 = jnp.maximum(
        jnp.dot(bf(h1), bf(w2).T, preferred_element_type=jnp.float32) + b2, 0.0)
    return jnp.dot(bf(h2), bf(w3).T, preferred_element_type=jnp.float32) + b3


if __name__ == "__main__":
    state_dim, hidden = 4, 32
    key = jax.random.PRNGKey(0)
    kx, k1, k2, k3 = jax.random.split(key, 4)

    w1, b1 = orthogonal_linear_params(k1, state_dim, hidden)
    w2, b2 = orthogonal_linear_params(k2, hidden, hidden)
    w3, b3 = orthogonal_linear_params(k3, hidden, 1)

    # Small batch (single tile) and a ragged multi-tile batch (grid > 1).
    for batch in (8, 300):
        x = jax.random.normal(jax.random.fold_in(kx, batch),
                              (batch, state_dim), jnp.float32)
        out = jax.block_until_ready(value_net_forward(x, w1, b1, w2, b2, w3, b3))
        ref = value_net_reference(x, w1, b1, w2, b2, w3, b3)
        assert out.shape == (batch, 1)
        assert jnp.allclose(out, ref, atol=5e-3, rtol=5e-3), (
            f"mismatch at batch={batch}: max err "
            f"{jnp.max(jnp.abs(out - ref))}")

    print("KERNEL_OK")
</pallas_src>

<mosaic_0001>
module attributes {stable_mosaic.version = 11 : i64} {
  func.func @value_net_kernel(%arg0: i32, %arg1: memref<128x4xbf16, #tpu.memory_space<vmem>>, %arg2: memref<32x4xbf16, #tpu.memory_space<vmem>>, %arg3: memref<32x1xf32, #tpu.memory_space<vmem>>, %arg4: memref<32x32xbf16, #tpu.memory_space<vmem>>, %arg5: memref<32x1xf32, #tpu.memory_space<vmem>>, %arg6: memref<1x32xbf16, #tpu.memory_space<vmem>>, %arg7: memref<1x1xf32, #tpu.memory_space<smem>>, %arg8: memref<1x128xf32, #tpu.memory_space<vmem>>) attributes {dimension_semantics = [#tpu.dimension_semantics<parallel>], iteration_bounds = array<i64: 1>, scalar_prefetch = 0 : i64, scratch_operands = 0 : i64, tpu.core_type = #tpu.core_type<tc>, window_params = [{transform_indices = @transform_0, window_bounds = array<i64: 128, 4>}, {pipeline_mode = #tpu.pipeline_mode<synchronous>, transform_indices = @transform_1, window_bounds = array<i64: 32, 4>}, {pipeline_mode = #tpu.pipeline_mode<synchronous>, transform_indices = @transform_2, window_bounds = array<i64: 32, 1>}, {pipeline_mode = #tpu.pipeline_mode<synchronous>, transform_indices = @transform_3, window_bounds = array<i64: 32, 32>}, {pipeline_mode = #tpu.pipeline_mode<synchronous>, transform_indices = @transform_4, window_bounds = array<i64: 32, 1>}, {pipeline_mode = #tpu.pipeline_mode<synchronous>, transform_indices = @transform_5, window_bounds = array<i64: 1, 32>}, {transform_indices = @transform_6, window_bounds = array<i64: 1, 1>}, {transform_indices = @transform_7, window_bounds = array<i64: 1, 128>}]} {
    %c0 = arith.constant 0 : index
    %c0_0 = arith.constant 0 : index
    %0 = vector.load %arg2[%c0, %c0_0] : memref<32x4xbf16, #tpu.memory_space<vmem>>, vector<32x4xbf16>
    %c0_1 = arith.constant 0 : index
    %c0_2 = arith.constant 0 : index
    %1 = vector.load %arg1[%c0_1, %c0_2] : memref<128x4xbf16, #tpu.memory_space<vmem>>, vector<128x4xbf16>
    %cst = arith.constant dense<0.000000e+00> : vector<32x128xf32>
    %2 = tpu.matmul %0, %1, %cst {dimension_numbers = #tpu.dot_dimension_numbers<[1], [1], [0], [0], [0, 0, 1, 0], [], []>} : vector<32x4xbf16>, vector<128x4xbf16>, vector<32x128xf32> -> vector<32x128xf32>
    %c0_3 = arith.constant 0 : index
    %c0_4 = arith.constant 0 : index
    %3 = vector.load %arg3[%c0_3, %c0_4] : memref<32x1xf32, #tpu.memory_space<vmem>>, vector<32x1xf32>
    %4 = vector.broadcast %3 : vector<32x1xf32> to vector<32x128xf32>
    %5 = arith.addf %2, %4 : vector<32x128xf32>
    %cst_5 = arith.constant 0.000000e+00 : f32
    %6 = vector.broadcast %cst_5 : f32 to vector<32x128xf32>
    %7 = arith.maximumf %5, %6 : vector<32x128xf32>
    %c0_6 = arith.constant 0 : index
    %c0_7 = arith.constant 0 : index
    %8 = vector.load %arg4[%c0_6, %c0_7] : memref<32x32xbf16, #tpu.memory_space<vmem>>, vector<32x32xbf16>
    %9 = arith.truncf %7 : vector<32x128xf32> to vector<32x128xbf16>
    %cst_8 = arith.constant dense<0.000000e+00> : vector<32x128xf32>
    %10 = tpu.matmul %8, %9, %cst_8 {dimension_numbers = #tpu.dot_dimension_numbers<[1], [0], [0], [1], [0, 0, 1, 1], [], []>} : vector<32x32xbf16>, vector<32x128xbf16>, vector<32x128xf32> -> vector<32x128xf32>
    %c0_9 = arith.constant 0 : index
    %c0_10 = arith.constant 0 : index
    %11 = vector.load %arg5[%c0_9, %c0_10] : memref<32x1xf32, #tpu.memory_space<vmem>>, vector<32x1xf32>
    %12 = vector.broadcast %11 : vector<32x1xf32> to vector<32x128xf32>
    %13 = arith.addf %10, %12 : vector<32x128xf32>
    %cst_11 = arith.constant 0.000000e+00 : f32
    %14 = vector.broadcast %cst_11 : f32 to vector<32x128xf32>
    %15 = arith.maximumf %13, %14 : vector<32x128xf32>
    %c0_12 = arith.constant 0 : index
    %c0_13 = arith.constant 0 : index
    %16 = vector.load %arg6[%c0_12, %c0_13] : memref<1x32xbf16, #tpu.memory_space<vmem>>, vector<1x32xbf16>
    %17 = arith.truncf %15 : vector<32x128xf32> to vector<32x128xbf16>
    %cst_14 = arith.constant dense<0.000000e+00> : vector<1x128xf32>
    %18 = tpu.matmul %16, %17, %cst_14 {dimension_numbers = #tpu.dot_dimension_numbers<[1], [0], [0], [1], [0, 0, 1, 1], [], []>} : vector<1x32xbf16>, vector<32x128xbf16>, vector<1x128xf32> -> vector<1x128xf32>
    %c0_15 = arith.constant 0 : index
    %c0_16 = arith.constant 0 : index
    %19 = memref.load %arg7[%c0_15, %c0_16] : memref<1x1xf32, #tpu.memory_space<smem>>
    %20 = vector.broadcast %19 : f32 to vector<1x128xf32>
    %21 = arith.addf %18, %20 : vector<1x128xf32>
    %c0_17 = arith.constant 0 : index
    %c0_18 = arith.constant 0 : index
    %22 = vector.load %arg8[%c0_17, %c0_18] : memref<1x128xf32, #tpu.memory_space<vmem>>, vector<1x128xf32>
    tpu.vector_store %arg8[%c0_17, %c0_18], %21 {strides = array<i32>} : memref<1x128xf32, #tpu.memory_space<vmem>>, vector<1x128xf32>,
    return
  }
  func.func @transform_0(%arg0: i32) -> (i32, i32) {
    %c0_i32 = arith.constant 0 : i32
    %c0_i32_0 = arith.constant 0 : i32
    return %arg0, %c0_i32 : i32, i32
  }
  func.func @transform_1(%arg0: i32) -> (i32, i32) {
    %c0_i32 = arith.constant 0 : i32
    %c0_i32_0 = arith.constant 0 : i32
    %c0_i32_1 = arith.constant 0 : i32
    return %c0_i32, %c0_i32_0 : i32, i32
  }
  func.func @transform_2(%arg0: i32) -> (i32, i32) {
    %c0_i32 = arith.constant 0 : i32
    %c0_i32_0 = arith.constant 0 : i32
    %c0_i32_1 = arith.constant 0 : i32
    return %c0_i32, %c0_i32_0 : i32, i32
  }
  func.func @transform_3(%arg0: i32) -> (i32, i32) {
    %c0_i32 = arith.constant 0 : i32
    %c0_i32_0 = arith.constant 0 : i32
    %c0_i32_1 = arith.constant 0 : i32
    return %c0_i32, %c0_i32_0 : i32, i32
  }
  func.func @transform_4(%arg0: i32) -> (i32, i32) {
    %c0_i32 = arith.constant 0 : i32
    %c0_i32_0 = arith.constant 0 : i32
    %c0_i32_1 = arith.constant 0 : i32
    return %c0_i32, %c0_i32_0 : i32, i32
  }
  func.func @transform_5(%arg0: i32) -> (i32, i32) {
    %c0_i32 = arith.constant 0 : i32
    %c0_i32_0 = arith.constant 0 : i32
    %c0_i32_1 = arith.constant 0 : i32
    return %c0_i32, %c0_i32_0 : i32, i32
  }
  func.func @transform_6(%arg0: i32) -> (i32, i32) {
    %c0_i32 = arith.constant 0 : i32
    %c0_i32_0 = arith.constant 0 : i32
    %c0_i32_1 = arith.constant 0 : i32
    return %c0_i32, %c0_i32_0 : i32, i32
  }
  func.func @transform_7(%arg0: i32) -> (i32, i32) {
    %c0_i32 = arith.constant 0 : i32
    %c0_i32_0 = arith.constant 0 : i32
    return %c0_i32, %arg0 : i32, i32
  }
}

</mosaic_0001>

<llo_original>
// kernel: tpu_custom_call.1
$region0: #{tpu_custom_call.1}
  #allocation0 [shape = 'u32[]', space=smem, size = 0x4, offset = 0x4, fixed_abs, tag = 'smem constant byte address 0x4 - core index']
  #allocation1 [shape = 'u32[144,128]{1,0:T(1,128)}', space=vmem, size = 0x12000, scoped, tag = 'internal scratch']
  #allocation2 [shape = 'f32[1,1]{1,0:T(1,128)S(6)}', space=smem, size = 0x200, scoped, tag = 'scoped memory for tpu_custom_call.1']
  %s0 = inlined_call_operand.vmem [shape: bf16[128,4], index: 0, kind: input, shape index: {}]
  %s1 = inlined_call_operand.vmem [shape: bf16[32,4], index: 1, kind: input, shape index: {}]
  %s2 = inlined_call_operand.vmem [shape: f32[32,1], index: 2, kind: input, shape index: {}]
  %s3 = inlined_call_operand.vmem [shape: bf16[32,32], index: 3, kind: input, shape index: {}]
  %s4 = inlined_call_operand.vmem [shape: f32[32,1], index: 4, kind: input, shape index: {}]
  %s5 = inlined_call_operand.vmem [shape: bf16[1,32], index: 5, kind: input, shape index: {}]
  %s6 = inlined_call_operand.<no memory space> [shape: f32[1,1], index: 6, kind: input, shape index: {}]
  %s7 = inlined_call_operand.hbm [shape: f32[1,128], index: 7, kind: output, shape index: {}]
  %s8 = sld [smem:[#allocation0]]
  $region38: #{tpu_custom_call.1} parent=0
    _
  %s10 = ssub.s32 1, %s8
  %s11 = scalar_select 0, %s10, %s8
  %12 = sst [smem:[#allocation2]] %s6
  $region1: #{tpu_custom_call.1} parent=0
    #allocation3 [shape = 'u8[512]{0}', space=vmem, size = 0x400, scoped, tag = 'output window, operand 0, single buffered']
    #allocation4 [shape = 's32[1]{0}', space=sflag, size = 0x4, scoped, tag = 'scoped memory for tpu_custom_call.1']
    %13 = vsyncpa [#allocation4], 0
    // Predicated region
    $region2: #{tpu_custom_call.1} parent=1 // pred_check
      _
    $region3: #{tpu_custom_call.1} parent=1 // pred_check_branch
      %15 = sbr.rel (0) target = $region5
    $region4: #{tpu_custom_call.1} parent=1 // pred_region
      _
    $region5: #{tpu_custom_call.1} parent=1 // pred_fallthru
      _
    // Predicated region
    $region6: #{tpu_custom_call.1} parent=1 // pred_check
      _
    $region7: #{tpu_custom_call.1} parent=1 // pred_check_branch
      %17 = sbr.rel (0) target = $region9
    $region8: #{tpu_custom_call.1} parent=1 // pred_region
      _
    $region9: #{tpu_custom_call.1} parent=1 // pred_fallthru
      _
    // Predicated region
    $region10: #{tpu_custom_call.1} parent=1 // pred_check
      _
    $region11: #{tpu_custom_call.1} parent=1 // pred_check_branch
      %19 = sbr.rel (0) target = $region13
    $region12: #{tpu_custom_call.1} parent=1 // pred_region
      _
    $region13: #{tpu_custom_call.1} parent=1 // pred_fallthru
      _
    // Predicated region
    $region14: #{tpu_custom_call.1} parent=1 // pred_check
      _
    $region15: #{tpu_custom_call.1} parent=1 // pred_check_branch
      %21 = sbr.rel (0) target = $region17
    $region16: #{tpu_custom_call.1} parent=1 // pred_region
      _
    $region17: #{tpu_custom_call.1} parent=1 // pred_fallthru
      _
    // Predicated region
    $region18: #{tpu_custom_call.1} parent=1 // pred_check
      _
    $region19: #{tpu_custom_call.1} parent=1 // pred_check_branch
      %23 = sbr.rel (0) target = $region21
    $region20: #{tpu_custom_call.1} parent=1 // pred_region
      _
    $region21: #{tpu_custom_call.1} parent=1 // pred_fallthru
      _
    // Predicated region
    $region22: #{tpu_custom_call.1} parent=1 // pred_check
      _
    $region23: #{tpu_custom_call.1} parent=1 // pred_check_branch
      %25 = sbr.rel (0) target = $region25
    $region24: #{tpu_custom_call.1} parent=1 // pred_region
      _
    $region25: #{tpu_custom_call.1} parent=1 // pred_fallthru
      _
    // Predicated region
    $region26: #{tpu_custom_call.1} parent=1 // pred_check
      _
    $region27: #{tpu_custom_call.1} parent=1 // pred_check_branch
      %27 = sbr.rel (0) target = $region29
    $region28: #{tpu_custom_call.1} parent=1 // pred_region
      _
    $region29: #{tpu_custom_call.1} parent=1 // pred_fallthru
      _
    %v29 = vld [vmem:[%s1] sm:$0xf]
    %v30 = vld [vmem:[%s1 + $0x4] sm:$0xf]
    %v31 = vld [vmem:[%s1 + $0x8] sm:$0xf]
    %v32 = vld [vmem:[%s1 + $0xc] sm:$0xf]
    %v33 = vld [vmem:[%s0] sm:$0xf]
    %v34 = vld [vmem:[%s0 + $0x4] sm:$0xf]
    %v35 = vld [vmem:[%s0 + $0x8] sm:$0xf]
    %v36 = vld [vmem:[%s0 + $0xc] sm:$0xf]
    %v37 = vld [vmem:[%s0 + $0x10] sm:$0xf]
    %v38 = vld [vmem:[%s0 + $0x14] sm:$0xf]
    %v39 = vld [vmem:[%s0 + $0x18] sm:$0xf]
    %v40 = vld [vmem:[%s0 + $0x1c] sm:$0xf]
    %v41 = vld [vmem:[%s0 + $0x20] sm:$0xf]
    %v42 = vld [vmem:[%s0 + $0x24] sm:$0xf]
    %v43 = vld [vmem:[%s0 + $0x28] sm:$0xf]
    %v44 = vld [vmem:[%s0 + $0x2c] sm:$0xf]
    %v45 = vld [vmem:[%s0 + $0x30] sm:$0xf]
    %v46 = vld [vmem:[%s0 + $0x34] sm:$0xf]
    %v47 = vld [vmem:[%s0 + $0x38] sm:$0xf]
    %v48 = vld [vmem:[%s0 + $0x3c] sm:$0xf]
    %v49 = vld [vmem:[%s2] sm:$0xff]
    %v50 = vld [vmem:[%s2 + $0x8] sm:$0xff]
    %v51 = vld [vmem:[%s2 + $0x10] sm:$0xff]
    %v52 = vld [vmem:[%s2 + $0x18] sm:$0xff]
    %54 = vset.pattern.permute.xlu0 0
    %55 = vperm.xlu0 %54, %v49
    %v56 = vpop.permute.xlu0 %55
    %59 = vset.pattern.permute.xlu0 0
    %60 = vperm.xlu0 %59, %v50
    %v61 = vpop.permute.xlu0 %60
    %64 = vset.pattern.permute.xlu0 0
    %65 = vperm.xlu0 %64, %v51
    %v66 = vpop.permute.xlu0 %65
    %69 = vset.pattern.permute.xlu0 0
    %70 = vperm.xlu0 %69, %v52
    %v71 = vpop.permute.xlu0 %70
    %v77 = vunpack.c.l.b16 %v29
    %v78 = vunpack.c.l.b16 %v30
    %v79 = vunpack.c.l.b16 %v31
    %v80 = vunpack.c.l.b16 %v32
    %v81 = vpack.c.b16 %v78, %v77
    %v82 = vpack.c.b16 %v80, %v79
    %v99 = vunpack.c.l.b16 %v33
    %v100 = vunpack.c.l.b16 %v34
    %v101 = vunpack.c.l.b16 %v35
    %v102 = vunpack.c.l.b16 %v36
    %v103 = vunpack.c.l.b16 %v37
    %v104 = vunpack.c.l.b16 %v38
    %v105 = vunpack.c.l.b16 %v39
    %v106 = vunpack.c.l.b16 %v40
    %v107 = vunpack.c.l.b16 %v41
    %v108 = vunpack.c.l.b16 %v42
    %v109 = vunpack.c.l.b16 %v43
    %v110 = vunpack.c.l.b16 %v44
    %v111 = vunpack.c.l.b16 %v45
    %v112 = vunpack.c.l.b16 %v46
    %v113 = vunpack.c.l.b16 %v47
    %v114 = vunpack.c.l.b16 %v48
    %v115 = vpack.c.b16 %v100, %v99
    %v116 = vpack.c.b16 %v102, %v101
    %v117 = vpack.c.b16 %v104, %v103
    %v118 = vpack.c.b16 %v106, %v105
    %v119 = vpack.c.b16 %v108, %v107
    %v120 = vpack.c.b16 %v110, %v109
    %v121 = vpack.c.b16 %v112, %v111
    %v122 = vpack.c.b16 %v114, %v113
    %vm123 = vcmask 31744
    %v125 = vsel %vm123, %v81, 0
    %v128 = vsel %vm123, %v82, 0
    %v131 = vsel %vm123, %v115, 0
    %v134 = vsel %vm123, %v116, 0
    %v137 = vsel %vm123, %v117, 0
    %v140 = vsel %vm123, %v118, 0
    %v143 = vsel %vm123, %v119, 0
    %v146 = vsel %vm123, %v120, 0
    %v149 = vsel %vm123, %v121, 0
    %v152 = vsel %vm123, %v122, 0
    %154 = vmatprep.subr.bf16.mxu0 0
    %155 = vmatpush1.bf16.xpose.msra.mxu0 %v131
    %156 = vmatprep.subr.bf16.mxu0 0
    %157 = vmatpush1.bf16.xpose.msra.mxu0 %v134
    %158 = vmatprep.subr.bf16.mxu0 0
    %159 = vmatpush1.bf16.xpose.msra.mxu0 %v137
    %160 = vmatprep.subr.bf16.mxu0 0
    %161 = vmatpush1.bf16.xpose.msra.mxu0 %v140
    %162 = vmatprep.subr.bf16.mxu0 0
    %163 = vmatpush1.bf16.xpose.msra.mxu0 %v143
    %164 = vmatprep.subr.bf16.mxu0 0
    %165 = vmatpush1.bf16.xpose.msra.mxu0 %v146
    %166 = vmatprep.subr.bf16.mxu0 0
    %167 = vmatpush1.bf16.xpose.msra.mxu0 %v149
    %168 = vmatprep.subr.bf16.mxu0 0
    %169 = vmatpush1.bf16.xpose.msra.mxu0 %v152
    %170 = vmatprep.subr.bf16.mxu0 0
    %171 = vmatpush1.bf16.xpose.msra.mxu0 0
    %172 = vmatprep.subr.bf16.mxu0 0
    %173 = vmatpush1.bf16.xpose.msra.mxu0 0
    %174 = vmatprep.subr.bf16.mxu0 0
    %175 = vmatpush1.bf16.xpose.msra.mxu0 0
    %176 = vmatprep.subr.bf16.mxu0 0
    %177 = vmatpush1.bf16.xpose.msra.mxu0 0
    %178 = vmatprep.subr.bf16.mxu0 0
    %179 = vmatpush1.bf16.xpose.msra.mxu0 0
    %180 = vmatprep.subr.bf16.mxu0 0
    %181 = vmatpush1.bf16.xpose.msra.mxu0 0
    %182 = vmatprep.subr.bf16.mxu0 0
    %183 = vmatpush1.bf16.xpose.msra.mxu0 0
    %184 = vmatprep.subr.bf16.mxu0 0
    %185 = vmatpush1.bf16.xpose.msra.mxu0 0
    %186 = vmatprep.mubr.bf16.mxu0 0
    %187 = vmatmul.mubr.bf16.gmra.mrb[0].mxu0 %v125
    %v188 = vpop.f32.mrb[0].mxu0
    %v189 = vadd.f32 %v56, %v188
    %v190 = vpop.f32.mrb[0].mxu0
    %v191 = vpop.f32.mrb[0].mxu0
    %v192 = vadd.f32 %v61, %v191
    %v193 = vpop.f32.mrb[0].mxu0
    %194 = vmatprep.mubr.bf16.mxu0 0
    %195 = vmatmul.mubr.bf16.gmra.mrb[0].mxu0 %v128
    %v196 = vpop.f32.mrb[0].mxu0
    %v197 = vadd.f32 %v66, %v196
    %v198 = vpop.f32.mrb[0].mxu0
    %v199 = vpop.f32.mrb[0].mxu0
    %v200 = vadd.f32 %v71, %v199
    %v201 = vpop.f32.mrb[0].mxu0
    %202 = vdwg.mxu0
    %v203 = vmax.f32 %v189, 0.0
    %v204 = vmax.f32 %v192, 0.0
    %v205 = vmax.f32 %v197, 0.0
    %v206 = vmax.f32 %v200, 0.0
    %v207 = vld [vmem:[%s3] sm:$0xf]
    %v208 = vld [vmem:[%s3 + $0x4] sm:$0xf]
    %v209 = vld [vmem:[%s3 + $0x8] sm:$0xf]
    %v210 = vld [vmem:[%s3 + $0xc] sm:$0xf]
    %v211 = vpack.c.bf16 %v204, %v203
    %v212 = vpack.c.bf16 %v206, %v205
    %v213 = vld [vmem:[%s4] sm:$0xff]
    %v214 = vld [vmem:[%s4 + $0x8] sm:$0xff]
    %v215 = vld [vmem:[%s4 + $0x10] sm:$0xff]
    %v216 = vld [vmem:[%s4 + $0x18] sm:$0xff]
    %218 = vset.pattern.permute.xlu0 0
    %219 = vperm.xlu0 %218, %v213
    %v220 = vpop.permute.xlu0 %219
    %223 = vset.pattern.permute.xlu0 0
    %224 = vperm.xlu0 %223, %v214
    %v225 = vpop.permute.xlu0 %224
    %228 = vset.pattern.permute.xlu0 0
    %229 = vperm.xlu0 %228, %v215
    %v230 = vpop.permute.xlu0 %229
    %233 = vset.pattern.permute.xlu0 0
    %234 = vperm.xlu0 %233, %v216
    %v235 = vpop.permute.xlu0 %234
    %v241 = vunpack.c.l.b16 %v207
    %v242 = vunpack.c.l.b16 %v208
    %v243 = vunpack.c.l.b16 %v209
    %v244 = vunpack.c.l.b16 %v210
    %v245 = vpack.c.b16 %v242, %v241
    %v246 = vpack.c.b16 %v244, %v243
    %vm247 = vcmask 261120
    %v249 = vsel %vm247, %v245, 0
    %v252 = vsel %vm247, %v246, 0
    %254 = vmatprep.subr.bf16.mxu0 0
    %255 = vmatpush1.bf16.msra.mxu0 %v211
    %256 = vmatprep.subr.bf16.mxu0 0
    %257 = vmatpush1.bf16.msra.mxu0 %v212
    %258 = vmatprep.subr.bf16.mxu0 0
    %259 = vmatpush1.bf16.msra.mxu0 0
    %260 = vmatprep.subr.bf16.mxu0 0
    %261 = vmatpush1.bf16.msra.mxu0 0
    %262 = vmatprep.subr.bf16.mxu0 0
    %263 = vmatpush1.bf16.msra.mxu0 0
    %264 = vmatprep.subr.bf16.mxu0 0
    %265 = vmatpush1.bf16.msra.mxu0 0
    %266 = vmatprep.subr.bf16.mxu0 0
    %267 = vmatpush1.bf16.msra.mxu0 0
    %268 = vmatprep.subr.bf16.mxu0 0
    %269 = vmatpush1.bf16.msra.mxu0 0
    %270 = vmatprep.subr.bf16.mxu0 0
    %271 = vmatpush1.bf16.msra.mxu0 0
    %272 = vmatprep.subr.bf16.mxu0 0
    %273 = vmatpush1.bf16.msra.mxu0 0
    %274 = vmatprep.subr.bf16.mxu0 0
    %275 = vmatpush1.bf16.msra.mxu0 0
    %276 = vmatprep.subr.bf16.mxu0 0
    %277 = vmatpush1.bf16.msra.mxu0 0
    %278 = vmatprep.subr.bf16.mxu0 0
    %279 = vmatpush1.bf16.msra.mxu0 0
    %280 = vmatprep.subr.bf16.mxu0 0
    %281 = vmatpush1.bf16.msra.mxu0 0
    %282 = vmatprep.subr.bf16.mxu0 0
    %283 = vmatpush1.bf16.msra.mxu0 0
    %284 = vmatprep.subr.bf16.mxu0 0
    %285 = vmatpush1.bf16.msra.mxu0 0
    %286 = vmatprep.mubr.bf16.mxu0 0
    %287 = vmatmul.mubr.bf16.gmra.mrb[0].mxu0 %v249
    %v288 = vpop.f32.mrb[0].mxu0
    %v289 = vadd.f32 %v220, %v288
    %v290 = vpop.f32.mrb[0].mxu0
    %v291 = vpop.f32.mrb[0].mxu0
    %v292 = vadd.f32 %v225, %v291
    %v293 = vpop.f32.mrb[0].mxu0
    %294 = vmatprep.mubr.bf16.mxu0 0
    %295 = vmatmul.mubr.bf16.gmra.mrb[0].mxu0 %v252
    %v296 = vpop.f32.mrb[0].mxu0
    %v297 = vadd.f32 %v230, %v296
    %v298 = vpop.f32.mrb[0].mxu0
    %v299 = vpop.f32.mrb[0].mxu0
    %v300 = vadd.f32 %v235, %v299
    %v301 = vpop.f32.mrb[0].mxu0
    %302 = vdwg.mxu0
    %v303 = vmax.f32 %v289, 0.0
    %v304 = vmax.f32 %v292, 0.0
    %v305 = vmax.f32 %v297, 0.0
    %v306 = vmax.f32 %v300, 0.0
    %v307 = vld [vmem:[%s5] sm:$0x1]
    %v308 = vpack.c.bf16 %v304, %v303
    %v309 = vpack.c.bf16 %v306, %v305
    %s310 = sld [smem:[#allocation2]]
    %v311 = vstv %s310
    %v313 = vsel %vm247, %v307, 0
    %315 = vmatprep.subr.bf16.mxu0 0
    %316 = vmatpush1.bf16.msra.mxu0 %v308
    %317 = vmatprep.subr.bf16.mxu0 0
    %318 = vmatpush1.bf16.msra.mxu0 %v309
    %319 = vmatprep.subr.bf16.mxu0 0
    %320 = vmatpush1.bf16.msra.mxu0 0
    %321 = vmatprep.subr.bf16.mxu0 0
    %322 = vmatpush1.bf16.msra.mxu0 0
    %323 = vmatprep.subr.bf16.mxu0 0
    %324 = vmatpush1.bf16.msra.mxu0 0
    %325 = vmatprep.subr.bf16.mxu0 0
    %326 = vmatpush1.bf16.msra.mxu0 0
    %327 = vmatprep.subr.bf16.mxu0 0
    %328 = vmatpush1.bf16.msra.mxu0 0
    %329 = vmatprep.subr.bf16.mxu0 0
    %330 = vmatpush1.bf16.msra.mxu0 0
    %331 = vmatprep.subr.bf16.mxu0 0
    %332 = vmatpush1.bf16.msra.mxu0 0
    %333 = vmatprep.subr.bf16.mxu0 0
    %334 = vmatpush1.bf16.msra.mxu0 0
    %335 = vmatprep.subr.bf16.mxu0 0
    %336 = vmatpush1.bf16.msra.mxu0 0
    %337 = vmatprep.subr.bf16.mxu0 0
    %338 = vmatpush1.bf16.msra.mxu0 0
    %339 = vmatprep.subr.bf16.mxu0 0
    %340 = vmatpush1.bf16.msra.mxu0 0
    %341 = vmatprep.subr.bf16.mxu0 0
    %342 = vmatpush1.bf16.msra.mxu0 0
    %343 = vmatprep.subr.bf16.mxu0 0
    %344 = vmatpush1.bf16.msra.mxu0 0
    %345 = vmatprep.subr.bf16.mxu0 0
    %346 = vmatpush1.bf16.msra.mxu0 0
    %347 = vmatprep.mubr.bf16.mxu0 0
    %348 = vmatmul.mubr.bf16.gmra.mrb[0].mxu0 %v313
    %v349 = vpop.f32.mrb[0].mxu0
    %v350 = vadd.f32 %v311, %v349
    %v351 = vpop.f32.mrb[0].mxu0
    %v352 = vpop.f32.mrb[0].mxu0
    %v353 = vpop.f32.mrb[0].mxu0
    %354 = vdwg.mxu0
    %355 = vst [vmem:[#allocation3] sm:$0x1] %v350
    // Predicated region
    $region30: #{tpu_custom_call.1} parent=1 // pred_check
      _
    $region31: #{tpu_custom_call.1} parent=1 // pred_check_branch
      %357 = sbr.rel (0) target = $region33
    $region32: #{tpu_custom_call.1} parent=1 // pred_region
      %s359 = ssub.s32 16, 16
      %360 = vsyncadd [#allocation4], %s359
      %s362 = sshll.u32 [#allocation3], 4
      %s363 = int_to_ptr.vmem [resolvable:$true] %s362
      %365 = dma.vmem_to_hbm [thread:$0]  %s363, 16, %s7, [#allocation4]
    $region33: #{tpu_custom_call.1} parent=1 // pred_fallthru
      _
    // Predicated region
    $region34: #{tpu_custom_call.1} parent=1 // pred_check
      _
    $region35: #{tpu_custom_call.1} parent=1 // pred_check_branch
      %367 = sbr.rel (0) target = $region37
    $region36: #{tpu_custom_call.1} parent=1 // pred_region
      %368 = dma.done [#allocation4], 16
    $region37: #{tpu_custom_call.1} parent=1 // pred_fallthru
      _
    %369 = vsyncpa [#allocation4], 1

</llo_original>
